<compile_context>
chip_gen: v7x
topology: tpu7x:2x2x1
jax: 0.10.0
libtpu: 0.0.40
codegen_flags: <defaults>
</compile_context>

<pallas_src>
import functools

import jax
import jax.numpy as jnp
from jax.experimental import pallas as pl
from jax.experimental.pallas import tpu as pltpu

LANE = 128
SUBLANE = 8


def _round_up(x, m):
    return ((x + m - 1) // m) * m


def _pad2d(a, rows, cols):
    r, c = a.shape
    if r == rows and c == cols:
        return a
    return jnp.pad(a, ((0, rows - r), (0, cols - c)))


# ---------------------------------------------------------------------------
# Kernel
# ---------------------------------------------------------------------------
def variational_block_kernel(x_ref, w1mu_ref, b1mu_ref, w1lv_ref, b1lv_ref,
                             w2_ref, b2_ref, eps_ref,
                             out_ref, mu_ref, logvar_ref):
    """One batch tile of the VariationalBlock forward."""
    x = x_ref[...]

    # dense1, split into two lane-dense matmuls (no lane-axis slice of h).
    mu = jnp.dot(x, w1mu_ref[...], preferred_element_type=jnp.float32)
    mu = mu + b1mu_ref[...]
    logvar = jnp.dot(x, w1lv_ref[...], preferred_element_type=jnp.float32)
    logvar = logvar + b1lv_ref[...]

    # reparameterize: z = mu + eps * exp(0.5 * logvar)
    # exp lands on the EUP slot -> effectively free next to the matmuls.
    # NOTE: eps is streamed from HBM for deterministic parity with the
    # reference; it could instead be generated in-kernel with pltpu.prng_*.
    std = jnp.exp(0.5 * logvar)
    z = mu + eps_ref[...] * std

    # dense2
    out = jnp.dot(z.astype(w2_ref.dtype), w2_ref[...],
                  preferred_element_type=jnp.float32)
    out = out + b2_ref[...]

    out_ref[...] = out.astype(out_ref.dtype)
    mu_ref[...] = mu.astype(mu_ref.dtype)
    logvar_ref[...] = logvar.astype(logvar_ref.dtype)


# ---------------------------------------------------------------------------
# One-time parameter preparation (PyTorch nn.Linear layout -> kernel layout)
# ---------------------------------------------------------------------------
def prepare_variational_params(w1, b1, w2, b2, n_features):
    """Split dense1 into mu/logvar slabs, transpose to [in, out], zero-pad
    every feature dim to a multiple of 128. Done once at init, not per call."""
    in_size = w1.shape[1]
    out_size = w2.shape[0]
    in_p = _round_up(in_size, LANE)
    n_p = _round_up(n_features, LANE)
    out_p = _round_up(out_size, LANE)

    w1_mu_t = _pad2d(w1[:n_features].T, in_p, n_p)         # [in_p, n_p]
    w1_lv_t = _pad2d(w1[n_features:].T, in_p, n_p)         # [in_p, n_p]
    b1_mu = _pad2d(b1[:n_features].reshape(1, -1), 1, n_p)
    b1_lv = _pad2d(b1[n_features:].reshape(1, -1), 1, n_p)
    w2_t = _pad2d(w2.T, n_p, out_p)                        # [n_p, out_p]
    b2_row = _pad2d(b2.reshape(1, -1), 1, out_p)

    meta = dict(in_size=in_size, n_features=n_features, out_size=out_size,
                in_p=in_p, n_p=n_p, out_p=out_p)
    params = (w1_mu_t, b1_mu, w1_lv_t, b1_lv, w2_t, b2_row)
    return params, meta


def _pick_batch_tile(b8, in_p, n_p, out_p, itemsize=4, vmem_budget=24 << 20):
    """Largest batch tile (multiple of 8, capped at 512) whose double-buffered
    activation streams + resident weights fit a VMEM budget that is safe for
    v7x's smaller VMEM as well as v5e/v6e."""
    weight_bytes = (2 * in_p * n_p + n_p * out_p + 2 * n_p + out_p) * itemsize
    row_bytes = (in_p + out_p + 3 * n_p) * itemsize  # x, eps, out, mu, logvar
    avail = max(vmem_budget - 2 * weight_bytes, 2 * SUBLANE * 2 * row_bytes)
    tb = (avail // (2 * row_bytes)) // SUBLANE * SUBLANE
    tb = max(SUBLANE, min(512, tb))
    return min(tb, b8)


# ---------------------------------------------------------------------------
# Wrapper
# ---------------------------------------------------------------------------
def variational_block_apply(params, meta, x, eps, *, interpret=False):
    """x: [B, in_size], eps: [B, n_features] -> (out, mu, logvar)."""
    w1_mu_t, b1_mu, w1_lv_t, b1_lv, w2_t, b2_row = params
    B = x.shape[0]
    in_p, n_p, out_p = meta["in_p"], meta["n_p"], meta["out_p"]
    n_features, out_size = meta["n_features"], meta["out_size"]
    itemsize = max(jnp.dtype(x.dtype).itemsize, 4)

    b8 = _round_up(B, SUBLANE)
    tb = _pick_batch_tile(b8, in_p, n_p, out_p, itemsize=itemsize)
    batch_p = _round_up(b8, tb)
    grid = (batch_p // tb,)

    # Zero-pad activations (zeros are neutral through both matmuls; padded
    # rows/cols are sliced away below).
    x_p = _pad2d(x, batch_p, in_p)
    eps_p = _pad2d(eps, batch_p, n_p)

    def row_spec(cols):
        return pl.BlockSpec((tb, cols), lambda i: (i, 0))

    def resident(shape):
        return pl.BlockSpec(shape, lambda i: (0, 0))

    out_pad, mu_pad, lv_pad = pl.pallas_call(
        variational_block_kernel,
        out_shape=(
            jax.ShapeDtypeStruct((batch_p, out_p), x.dtype),
            jax.ShapeDtypeStruct((batch_p, n_p), x.dtype),
            jax.ShapeDtypeStruct((batch_p, n_p), x.dtype),
        ),
        grid=grid,
        in_specs=[
            row_spec(in_p),             # x tile
            resident((in_p, n_p)),      # W1_mu (VMEM-resident across grid)
            resident((1, n_p)),         # b1_mu
            resident((in_p, n_p)),      # W1_logvar
            resident((1, n_p)),         # b1_logvar
            resident((n_p, out_p)),     # W2
            resident((1, out_p)),       # b2
            row_spec(n_p),              # eps tile
        ],
        out_specs=(
            row_spec(out_p),            # out
            row_spec(n_p),              # mu
            row_spec(n_p),              # logvar
        ),
        compiler_params=pltpu.CompilerParams(
            dimension_semantics=("parallel",),
            vmem_limit_bytes=32 << 20,
        ),
        interpret=interpret,
    )(x_p, w1_mu_t, b1_mu, w1_lv_t, b1_lv, w2_t, b2_row, eps_p)

    out = out_pad[:B, :out_size]
    mu = mu_pad[:B, :n_features]
    logvar = lv_pad[:B, :n_features]
    return out, mu, logvar


# TODO(synk): the surrounding ConvolutionalAutoEncoder (Myronenko 3-D conv
# encoder/decoder, conv1x1x1, trilinear upsampling) is not implemented here;
# this kernel covers the VariationalBlock dense bottleneck of var_layer.


if __name__ == "__main__":
    # Small shapes consistent with the module: the VAE uses vae_features=128
    # latent features; in_size/out_size = prod(reduced_shape), e.g.
    # 16 reduced feature maps over a 2x2x2 latent grid -> 128.
    B, in_size, n_features, out_size = 2, 128, 128, 128

    key = jax.random.PRNGKey(0)
    k_x, k_w1, k_b1, k_w2, k_b2, k_eps = jax.random.split(key, 6)

    x = jax.random.normal(k_x, (B, in_size), dtype=jnp.float32)

    # PyTorch nn.Linear-style uniform init.
    bound1 = 1.0 / jnp.sqrt(in_size)
    w1 = jax.random.uniform(k_w1, (2 * n_features, in_size),
                            minval=-bound1, maxval=bound1, dtype=jnp.float32)
    b1 = jax.random.uniform(k_b1, (2 * n_features,),
                            minval=-bound1, maxval=bound1, dtype=jnp.float32)
    bound2 = 1.0 / jnp.sqrt(n_features)
    w2 = jax.random.uniform(k_w2, (out_size, n_features),
                            minval=-bound2, maxval=bound2, dtype=jnp.float32)
    b2 = jax.random.uniform(k_b2, (out_size,),
                            minval=-bound2, maxval=bound2, dtype=jnp.float32)

    # eps ~ N(0,1) (torch.randn_like equivalent), host-generated for determinism.
    eps = jax.random.normal(k_eps, (B, n_features), dtype=jnp.float32)

    # One-time param prep (split / transpose / pad), then the fused kernel.
    params, meta = prepare_variational_params(w1, b1, w2, b2, n_features)
    out, mu, logvar = variational_block_apply(params, meta, x, eps)
    jax.block_until_ready((out, mu, logvar))

    # Plain-JAX reference (high-precision matmuls).
    hp = jax.lax.Precision.HIGHEST
    h_ref = jnp.dot(x, w1.T, precision=hp) + b1
    mu_ref, logvar_ref = h_ref[:, :n_features], h_ref[:, n_features:]
    z_ref = mu_ref + eps * jnp.exp(0.5 * logvar_ref)
    out_ref = jnp.dot(z_ref, w2.T, precision=hp) + b2

    assert out.shape == (B, out_size)
    assert mu.shape == (B, n_features) and logvar.shape == (B, n_features)
    assert jnp.allclose(mu, mu_ref, atol=1e-4, rtol=1e-4), "mu mismatch"
    assert jnp.allclose(logvar, logvar_ref, atol=1e-4, rtol=1e-4), "logvar mismatch"
    assert jnp.allclose(out, out_ref, atol=1e-4, rtol=1e-4), "out mismatch"

    print("KERNEL_OK")
</pallas_src>

<mosaic_0001>
module attributes {stable_mosaic.version = 11 : i64} {
  func.func @variational_block_kernel(%arg0: i32, %arg1: memref<8x128xf32, #tpu.memory_space<vmem>>, %arg2: memref<128x128xf32, #tpu.memory_space<vmem>>, %arg3: memref<1x128xf32, #tpu.memory_space<vmem>>, %arg4: memref<128x128xf32, #tpu.memory_space<vmem>>, %arg5: memref<1x128xf32, #tpu.memory_space<vmem>>, %arg6: memref<128x128xf32, #tpu.memory_space<vmem>>, %arg7: memref<1x128xf32, #tpu.memory_space<vmem>>, %arg8: memref<8x128xf32, #tpu.memory_space<vmem>>, %arg9: memref<8x128xf32, #tpu.memory_space<vmem>>, %arg10: memref<8x128xf32, #tpu.memory_space<vmem>>, %arg11: memref<8x128xf32, #tpu.memory_space<vmem>>) attributes {dimension_semantics = [#tpu.dimension_semantics<parallel>], iteration_bounds = array<i64: 1>, scalar_prefetch = 0 : i64, scratch_operands = 0 : i64, tpu.core_type = #tpu.core_type<tc>, window_params = [{transform_indices = @transform_0, window_bounds = array<i64: 8, 128>}, {pipeline_mode = #tpu.pipeline_mode<synchronous>, transform_indices = @transform_1, window_bounds = array<i64: 128, 128>}, {pipeline_mode = #tpu.pipeline_mode<synchronous>, transform_indices = @transform_2, window_bounds = array<i64: 1, 128>}, {pipeline_mode = #tpu.pipeline_mode<synchronous>, transform_indices = @transform_3, window_bounds = array<i64: 128, 128>}, {pipeline_mode = #tpu.pipeline_mode<synchronous>, transform_indices = @transform_4, window_bounds = array<i64: 1, 128>}, {pipeline_mode = #tpu.pipeline_mode<synchronous>, transform_indices = @transform_5, window_bounds = array<i64: 128, 128>}, {pipeline_mode = #tpu.pipeline_mode<synchronous>, transform_indices = @transform_6, window_bounds = array<i64: 1, 128>}, {transform_indices = @transform_7, window_bounds = array<i64: 8, 128>}, {transform_indices = @transform_8, window_bounds = array<i64: 8, 128>}, {transform_indices = @transform_9, window_bounds = array<i64: 8, 128>}, {transform_indices = @transform_10, window_bounds = array<i64: 8, 128>}]} {
    %c0 = arith.constant 0 : index
    %c0_0 = arith.constant 0 : index
    %0 = vector.load %arg1[%c0, %c0_0] : memref<8x128xf32, #tpu.memory_space<vmem>>, vector<8x128xf32>
    %c0_1 = arith.constant 0 : index
    %c0_2 = arith.constant 0 : index
    %1 = vector.load %arg2[%c0_1, %c0_2] : memref<128x128xf32, #tpu.memory_space<vmem>>, vector<128x128xf32>
    %cst = arith.constant dense<0.000000e+00> : vector<8x128xf32>
    %2 = tpu.matmul %0, %1, %cst {dimension_numbers = #tpu.dot_dimension_numbers<[1], [0], [0], [1], [0, 0, 1, 1], [], []>} : vector<8x128xf32>, vector<128x128xf32>, vector<8x128xf32> -> vector<8x128xf32>
    %c0_3 = arith.constant 0 : index
    %c0_4 = arith.constant 0 : index
    %3 = vector.load %arg3[%c0_3, %c0_4] : memref<1x128xf32, #tpu.memory_space<vmem>>, vector<1x128xf32>
    %4 = vector.broadcast %3 : vector<1x128xf32> to vector<8x128xf32>
    %5 = arith.addf %2, %4 : vector<8x128xf32>
    %c0_5 = arith.constant 0 : index
    %c0_6 = arith.constant 0 : index
    %6 = vector.load %arg4[%c0_5, %c0_6] : memref<128x128xf32, #tpu.memory_space<vmem>>, vector<128x128xf32>
    %cst_7 = arith.constant dense<0.000000e+00> : vector<8x128xf32>
    %7 = tpu.matmul %0, %6, %cst_7 {dimension_numbers = #tpu.dot_dimension_numbers<[1], [0], [0], [1], [0, 0, 1, 1], [], []>} : vector<8x128xf32>, vector<128x128xf32>, vector<8x128xf32> -> vector<8x128xf32>
    %c0_8 = arith.constant 0 : index
    %c0_9 = arith.constant 0 : index
    %8 = vector.load %arg5[%c0_8, %c0_9] : memref<1x128xf32, #tpu.memory_space<vmem>>, vector<1x128xf32>
    %9 = vector.broadcast %8 : vector<1x128xf32> to vector<8x128xf32>
    %10 = arith.addf %7, %9 : vector<8x128xf32>
    %cst_10 = arith.constant 5.000000e-01 : f32
    %11 = vector.broadcast %cst_10 : f32 to vector<8x128xf32>
    %12 = arith.mulf %11, %10 : vector<8x128xf32>
    %13 = math.exp %12 : vector<8x128xf32>
    %c0_11 = arith.constant 0 : index
    %c0_12 = arith.constant 0 : index
    %14 = vector.load %arg8[%c0_11, %c0_12] : memref<8x128xf32, #tpu.memory_space<vmem>>, vector<8x128xf32>
    %15 = arith.mulf %14, %13 : vector<8x128xf32>
    %16 = arith.addf %5, %15 : vector<8x128xf32>
    %c0_13 = arith.constant 0 : index
    %c0_14 = arith.constant 0 : index
    %17 = vector.load %arg6[%c0_13, %c0_14] : memref<128x128xf32, #tpu.memory_space<vmem>>, vector<128x128xf32>
    %cst_15 = arith.constant dense<0.000000e+00> : vector<8x128xf32>
    %18 = tpu.matmul %16, %17, %cst_15 {dimension_numbers = #tpu.dot_dimension_numbers<[1], [0], [0], [1], [0, 0, 1, 1], [], []>} : vector<8x128xf32>, vector<128x128xf32>, vector<8x128xf32> -> vector<8x128xf32>
    %c0_16 = arith.constant 0 : index
    %c0_17 = arith.constant 0 : index
    %19 = vector.load %arg7[%c0_16, %c0_17] : memref<1x128xf32, #tpu.memory_space<vmem>>, vector<1x128xf32>
    %20 = vector.broadcast %19 : vector<1x128xf32> to vector<8x128xf32>
    %21 = arith.addf %18, %20 : vector<8x128xf32>
    %c0_18 = arith.constant 0 : index
    %c0_19 = arith.constant 0 : index
    %22 = vector.load %arg9[%c0_18, %c0_19] : memref<8x128xf32, #tpu.memory_space<vmem>>, vector<8x128xf32>
    tpu.vector_store %arg9[%c0_18, %c0_19], %21 {strides = array<i32>} : memref<8x128xf32, #tpu.memory_space<vmem>>, vector<8x128xf32>,
    %c0_20 = arith.constant 0 : index
    %c0_21 = arith.constant 0 : index
    %23 = vector.load %arg10[%c0_20, %c0_21] : memref<8x128xf32, #tpu.memory_space<vmem>>, vector<8x128xf32>
    tpu.vector_store %arg10[%c0_20, %c0_21], %5 {strides = array<i32>} : memref<8x128xf32, #tpu.memory_space<vmem>>, vector<8x128xf32>,
    %c0_22 = arith.constant 0 : index
    %c0_23 = arith.constant 0 : index
    %24 = vector.load %arg11[%c0_22, %c0_23] : memref<8x128xf32, #tpu.memory_space<vmem>>, vector<8x128xf32>
    tpu.vector_store %arg11[%c0_22, %c0_23], %10 {strides = array<i32>} : memref<8x128xf32, #tpu.memory_space<vmem>>, vector<8x128xf32>,
    return
  }
  func.func @transform_0(%arg0: i32) -> (i32, i32) {
    %c0_i32 = arith.constant 0 : i32
    %c0_i32_0 = arith.constant 0 : i32
    return %arg0, %c0_i32 : i32, i32
  }
  func.func @transform_1(%arg0: i32) -> (i32, i32) {
    %c0_i32 = arith.constant 0 : i32
    %c0_i32_0 = arith.constant 0 : i32
    %c0_i32_1 = arith.constant 0 : i32
    return %c0_i32, %c0_i32_0 : i32, i32
  }
  func.func @transform_2(%arg0: i32) -> (i32, i32) {
    %c0_i32 = arith.constant 0 : i32
    %c0_i32_0 = arith.constant 0 : i32
    %c0_i32_1 = arith.constant 0 : i32
    return %c0_i32, %c0_i32_0 : i32, i32
  }
  func.func @transform_3(%arg0: i32) -> (i32, i32) {
    %c0_i32 = arith.constant 0 : i32
    %c0_i32_0 = arith.constant 0 : i32
    %c0_i32_1 = arith.constant 0 : i32
    return %c0_i32, %c0_i32_0 : i32, i32
  }
  func.func @transform_4(%arg0: i32) -> (i32, i32) {
    %c0_i32 = arith.constant 0 : i32
    %c0_i32_0 = arith.constant 0 : i32
    %c0_i32_1 = arith.constant 0 : i32
    return %c0_i32, %c0_i32_0 : i32, i32
  }
  func.func @transform_5(%arg0: i32) -> (i32, i32) {
    %c0_i32 = arith.constant 0 : i32
    %c0_i32_0 = arith.constant 0 : i32
    %c0_i32_1 = arith.constant 0 : i32
    return %c0_i32, %c0_i32_0 : i32, i32
  }
  func.func @transform_6(%arg0: i32) -> (i32, i32) {
    %c0_i32 = arith.constant 0 : i32
    %c0_i32_0 = arith.constant 0 : i32
    %c0_i32_1 = arith.constant 0 : i32
    return %c0_i32, %c0_i32_0 : i32, i32
  }
  func.func @transform_7(%arg0: i32) -> (i32, i32) {
    %c0_i32 = arith.constant 0 : i32
    %c0_i32_0 = arith.constant 0 : i32
    return %arg0, %c0_i32 : i32, i32
  }
  func.func @transform_8(%arg0: i32) -> (i32, i32) {
    %c0_i32 = arith.constant 0 : i32
    %c0_i32_0 = arith.constant 0 : i32
    return %arg0, %c0_i32 : i32, i32
  }
  func.func @transform_9(%arg0: i32) -> (i32, i32) {
    %c0_i32 = arith.constant 0 : i32
    %c0_i32_0 = arith.constant 0 : i32
    return %arg0, %c0_i32 : i32, i32
  }
  func.func @transform_10(%arg0: i32) -> (i32, i32) {
    %c0_i32 = arith.constant 0 : i32
    %c0_i32_0 = arith.constant 0 : i32
    return %arg0, %c0_i32 : i32, i32
  }
}

</mosaic_0001>

<llo_original>
// kernel: tpu_custom_call.1
$region0: #{tpu_custom_call.1}
  #allocation0 [shape = 'u32[]', space=smem, size = 0x4, offset = 0x4, fixed_abs, tag = 'smem constant byte address 0x4 - core index']
  #allocation1 [shape = 'u32[144,128]{1,0:T(1,128)}', space=vmem, size = 0x12000, scoped, tag = 'internal scratch']
  %s0 = inlined_call_operand.hbm [shape: f32[8,128], index: 0, kind: input, shape index: {}]
  %s1 = inlined_call_operand.hbm [shape: f32[128,128], index: 1, kind: input, shape index: {}]
  %s2 = inlined_call_operand.vmem [shape: f32[1,128], index: 2, kind: input, shape index: {}]
  %s3 = inlined_call_operand.hbm [shape: f32[128,128], index: 3, kind: input, shape index: {}]
  %s4 = inlined_call_operand.vmem [shape: f32[1,128], index: 4, kind: input, shape index: {}]
  %s5 = inlined_call_operand.hbm [shape: f32[128,128], index: 5, kind: input, shape index: {}]
  %s6 = inlined_call_operand.vmem [shape: f32[1,128], index: 6, kind: input, shape index: {}]
  %s7 = inlined_call_operand.vmem [shape: f32[8,128], index: 7, kind: input, shape index: {}]
  %s8 = inlined_call_operand.hbm [shape: f32[8,128], index: 8, kind: output, shape index: {0}]
  %s9 = inlined_call_operand.hbm [shape: f32[8,128], index: 9, kind: output, shape index: {1}]
  %s10 = inlined_call_operand.hbm [shape: f32[8,128], index: 10, kind: output, shape index: {2}]
  %11 = xla_tuple %s8, %s9, %s10
  %s12 = sld [smem:[#allocation0]]
  $region74: #{tpu_custom_call.1} parent=0
    _
  %s14 = ssub.s32 1, %s12
  %s15 = scalar_select 0, %s14, %s12
  $region1: #{tpu_custom_call.1} parent=0
    #allocation2 [shape = 'u8[4096]{0}', space=vmem, size = 0x1000, scoped, tag = 'input window, operand 0, single buffered']
    #allocation3 [shape = 's32[1]{0}', space=sflag, size = 0x4, scoped, tag = 'scoped memory for tpu_custom_call.1']
    #allocation4 [shape = 's32[1]{0}', space=sflag, size = 0x4, scoped, tag = 'scoped memory for tpu_custom_call.1']
    #allocation5 [shape = 'u8[65536]{0}', space=vmem, size = 0x10000, scoped, tag = 'input window, operand 1, single buffered']
    #allocation6 [shape = 's32[1]{0}', space=sflag, size = 0x4, scoped, tag = 'scoped memory for tpu_custom_call.1']
    #allocation7 [shape = 'u8[65536]{0}', space=vmem, size = 0x10000, scoped, tag = 'input window, operand 3, single buffered']
    #allocation8 [shape = 'u8[65536]{0}', space=vmem, size = 0x10000, scoped, tag = 'input window, operand 5, single buffered']
    #allocation9 [shape = 's32[1]{0}', space=sflag, size = 0x4, scoped, tag = 'scoped memory for tpu_custom_call.1']
    #allocation10 [shape = 'u8[4096]{0}', space=vmem, size = 0x1000, scoped, tag = 'output window, operand 0, single buffered']
    #allocation11 [shape = 'u8[4096]{0}', space=vmem, size = 0x1000, scoped, tag = 'output window, operand 1, single buffered']
    #allocation12 [shape = 's32[1]{0}', space=sflag, size = 0x4, scoped, tag = 'scoped memory for tpu_custom_call.1']
    #allocation13 [shape = 'u8[4096]{0}', space=vmem, size = 0x1000, scoped, tag = 'output window, operand 2, single buffered']
    %16 = vsyncpa [#allocation3], 0
    %17 = vsyncpa [#allocation6], 0
    %18 = vsyncpa [#allocation9], 0
    %19 = vsyncpa [#allocation4], 0
    %20 = vsyncpa [#allocation12], 0
    // Predicated region
    $region2: #{tpu_custom_call.1} parent=1 // pred_check
      _
    $region3: #{tpu_custom_call.1} parent=1 // pred_check_branch
      %22 = sbr.rel (0) target = $region5
    $region4: #{tpu_custom_call.1} parent=1 // pred_region
      %s24 = ssub.s32 128, 128
      %25 = vsyncadd [#allocation3], %s24
      %s27 = sshll.u32 [#allocation2], 4
      %s28 = int_to_ptr.vmem [resolvable:$true] %s27
      %30 = dma.hbm_to_vmem [thread:$0]  %s0, 128, %s28, [#allocation3]
    $region5: #{tpu_custom_call.1} parent=1 // pred_fallthru
      _
    // Predicated region
    $region6: #{tpu_custom_call.1} parent=1 // pred_check
      _
    $region7: #{tpu_custom_call.1} parent=1 // pred_check_branch
      %32 = sbr.rel (0) target = $region9
    $region8: #{tpu_custom_call.1} parent=1 // pred_region
      %s34 = ssub.s32 2048, 2048
      %35 = vsyncadd [#allocation6], %s34
      %s36 = sshll.u32 [#allocation5], 4
      %s37 = int_to_ptr.vmem [resolvable:$true] %s36
      %42 = dma.hbm_to_vmem [thread:$0]  %s1, 2048, %s37, [#allocation6], 128, 128, 8
    $region9: #{tpu_custom_call.1} parent=1 // pred_fallthru
      _
    // Predicated region
    $region10: #{tpu_custom_call.1} parent=1 // pred_check
      _
    $region11: #{tpu_custom_call.1} parent=1 // pred_check_branch
      %44 = sbr.rel (0) target = $region13
    $region12: #{tpu_custom_call.1} parent=1 // pred_region
      _
    $region13: #{tpu_custom_call.1} parent=1 // pred_fallthru
      _
    // Predicated region
    $region14: #{tpu_custom_call.1} parent=1 // pred_check
      _
    $region15: #{tpu_custom_call.1} parent=1 // pred_check_branch
      %46 = sbr.rel (0) target = $region17
    $region16: #{tpu_custom_call.1} parent=1 // pred_region
      %s48 = ssub.s32 2048, 2048
      %49 = vsyncadd [#allocation6], %s48
      %s50 = sshll.u32 [#allocation7], 4
      %s51 = int_to_ptr.vmem [resolvable:$true] %s50
      %56 = dma.hbm_to_vmem [thread:$0]  %s3, 2048, %s51, [#allocation6], 128, 128, 8
    $region17: #{tpu_custom_call.1} parent=1 // pred_fallthru
      _
    // Predicated region
    $region18: #{tpu_custom_call.1} parent=1 // pred_check
      _
    $region19: #{tpu_custom_call.1} parent=1 // pred_check_branch
      %58 = sbr.rel (0) target = $region21
    $region20: #{tpu_custom_call.1} parent=1 // pred_region
      _
    $region21: #{tpu_custom_call.1} parent=1 // pred_fallthru
      _
    // Predicated region
    $region22: #{tpu_custom_call.1} parent=1 // pred_check
      _
    $region23: #{tpu_custom_call.1} parent=1 // pred_check_branch
      %60 = sbr.rel (0) target = $region25
    $region24: #{tpu_custom_call.1} parent=1 // pred_region
      %s62 = ssub.s32 2048, 2048
      %63 = vsyncadd [#allocation9], %s62
      %s64 = sshll.u32 [#allocation8], 4
      %s65 = int_to_ptr.vmem [resolvable:$true] %s64
      %70 = dma.hbm_to_vmem [thread:$0]  %s5, 2048, %s65, [#allocation9], 128, 128, 8
    $region25: #{tpu_custom_call.1} parent=1 // pred_fallthru
      _
    // Predicated region
    $region26: #{tpu_custom_call.1} parent=1 // pred_check
      _
    $region27: #{tpu_custom_call.1} parent=1 // pred_check_branch
      %72 = sbr.rel (0) target = $region29
    $region28: #{tpu_custom_call.1} parent=1 // pred_region
      _
    $region29: #{tpu_custom_call.1} parent=1 // pred_fallthru
      _
    // Predicated region
    $region30: #{tpu_custom_call.1} parent=1 // pred_check
      _
    $region31: #{tpu_custom_call.1} parent=1 // pred_check_branch
      %74 = sbr.rel (0) target = $region33
    $region32: #{tpu_custom_call.1} parent=1 // pred_region
      _
    $region33: #{tpu_custom_call.1} parent=1 // pred_fallthru
      _
    // Predicated region
    $region34: #{tpu_custom_call.1} parent=1 // pred_check
      _
    $region35: #{tpu_custom_call.1} parent=1 // pred_check_branch
      %76 = sbr.rel (0) target = $region37
    $region36: #{tpu_custom_call.1} parent=1 // pred_region
      %77 = dma.done [#allocation3], 128
    $region37: #{tpu_custom_call.1} parent=1 // pred_fallthru
      _
    // Predicated region
    $region38: #{tpu_custom_call.1} parent=1 // pred_check
      _
    $region39: #{tpu_custom_call.1} parent=1 // pred_check_branch
      %79 = sbr.rel (0) target = $region41
    $region40: #{tpu_custom_call.1} parent=1 // pred_region
      %80 = dma.done [#allocation6], 2048
    $region41: #{tpu_custom_call.1} parent=1 // pred_fallthru
      _
    // Predicated region
    $region42: #{tpu_custom_call.1} parent=1 // pred_check
      _
    $region43: #{tpu_custom_call.1} parent=1 // pred_check_branch
      %82 = sbr.rel (0) target = $region45
    $region44: #{tpu_custom_call.1} parent=1 // pred_region
      %83 = dma.done [#allocation6], 2048
    $region45: #{tpu_custom_call.1} parent=1 // pred_fallthru
      _
    // Predicated region
    $region46: #{tpu_custom_call.1} parent=1 // pred_check
      _
    $region47: #{tpu_custom_call.1} parent=1 // pred_check_branch
      %85 = sbr.rel (0) target = $region49
    $region48: #{tpu_custom_call.1} parent=1 // pred_region
      %86 = dma.done [#allocation9], 2048
    $region49: #{tpu_custom_call.1} parent=1 // pred_fallthru
      _
    %v87 = vld [vmem:[#allocation2] sm:$0xff]
    %v88 = vld [vmem:[#allocation5] sm:$0xff]
    %v89 = vld [vmem:[#allocation5 + $0x8] sm:$0xff]
    %v90 = vld [vmem:[#allocation5 + $0x10] sm:$0xff]
    %v91 = vld [vmem:[#allocation5 + $0x18] sm:$0xff]
    %v92 = vld [vmem:[#allocation5 + $0x20] sm:$0xff]
    %v93 = vld [vmem:[#allocation5 + $0x28] sm:$0xff]
    %v94 = vld [vmem:[#allocation5 + $0x30] sm:$0xff]
    %v95 = vld [vmem:[#allocation5 + $0x38] sm:$0xff]
    %v96 = vld [vmem:[#allocation5 + $0x40] sm:$0xff]
    %v97 = vld [vmem:[#allocation5 + $0x48] sm:$0xff]
    %v98 = vld [vmem:[#allocation5 + $0x50] sm:$0xff]
    %v99 = vld [vmem:[#allocation5 + $0x58] sm:$0xff]
    %v100 = vld [vmem:[#allocation5 + $0x60] sm:$0xff]
    %v101 = vld [vmem:[#allocation5 + $0x68] sm:$0xff]
    %v102 = vld [vmem:[#allocation5 + $0x70] sm:$0xff]
    %v103 = vld [vmem:[#allocation5 + $0x78] sm:$0xff]
    %v104 = vld [vmem:[%s2] sm:$0x1]
    %v106 = vlaneseq
    %v107 = vshrl.u32 %v106, 7
    %v108 = vsub.s32 0, %v107
    %v109 = vrot.slane %v104, %v108
    %111 = vmatprep.subr.mxu0 0.0
    %112 = vmatpush1.msra.mxu0 %v88
    %113 = vmatprep.subr.mxu0 0.0
    %114 = vmatpush1.msra.mxu0 %v89
    %115 = vmatprep.subr.mxu0 0.0
    %116 = vmatpush1.msra.mxu0 %v90
    %117 = vmatprep.subr.mxu0 0.0
    %118 = vmatpush1.msra.mxu0 %v91
    %119 = vmatprep.subr.mxu0 0.0
    %120 = vmatpush1.msra.mxu0 %v92
    %121 = vmatprep.subr.mxu0 0.0
    %122 = vmatpush1.msra.mxu0 %v93
    %123 = vmatprep.subr.mxu0 0.0
    %124 = vmatpush1.msra.mxu0 %v94
    %125 = vmatprep.subr.mxu0 0.0
    %126 = vmatpush1.msra.mxu0 %v95
    %127 = vmatprep.subr.mxu0 0.0
    %128 = vmatpush1.msra.mxu0 %v96
    %129 = vmatprep.subr.mxu0 0.0
    %130 = vmatpush1.msra.mxu0 %v97
    %131 = vmatprep.subr.mxu0 0.0
    %132 = vmatpush1.msra.mxu0 %v98
    %133 = vmatprep.subr.mxu0 0.0
    %134 = vmatpush1.msra.mxu0 %v99
    %135 = vmatprep.subr.mxu0 0.0
    %136 = vmatpush1.msra.mxu0 %v100
    %137 = vmatprep.subr.mxu0 0.0
    %138 = vmatpush1.msra.mxu0 %v101
    %139 = vmatprep.subr.mxu0 0.0
    %140 = vmatpush1.msra.mxu0 %v102
    %141 = vmatprep.subr.mxu0 0.0
    %142 = vmatpush1.msra.mxu0 %v103
    %143 = vmatprep.subr.mxu0 0.0
    %144 = vmatpush1.msra.mxu0 0.0
    %145 = vmatprep.subr.mxu0 0.0
    %146 = vmatpush1.msra.mxu0 0.0
    %147 = vmatprep.subr.mxu0 0.0
    %148 = vmatpush1.msra.mxu0 0.0
    %149 = vmatprep.subr.mxu0 0.0
    %150 = vmatpush1.msra.mxu0 0.0
    %151 = vmatprep.subr.mxu0 0.0
    %152 = vmatpush1.msra.mxu0 0.0
    %153 = vmatprep.subr.mxu0 0.0
    %154 = vmatpush1.msra.mxu0 0.0
    %155 = vmatprep.subr.mxu0 0.0
    %156 = vmatpush1.msra.mxu0 0.0
    %157 = vmatprep.subr.mxu0 0.0
    %158 = vmatpush1.msra.mxu0 0.0
    %159 = vmatprep.subr.mxu0 0.0
    %160 = vmatpush1.msra.mxu0 0.0
    %161 = vmatprep.subr.mxu0 0.0
    %162 = vmatpush1.msra.mxu0 0.0
    %163 = vmatprep.subr.mxu0 0.0
    %164 = vmatpush1.msra.mxu0 0.0
    %165 = vmatprep.subr.mxu0 0.0
    %166 = vmatpush1.msra.mxu0 0.0
    %167 = vmatprep.subr.mxu0 0.0
    %168 = vmatpush1.msra.mxu0 0.0
    %169 = vmatprep.subr.mxu0 0.0
    %170 = vmatpush1.msra.mxu0 0.0
    %171 = vmatprep.subr.mxu0 0.0
    %172 = vmatpush1.msra.mxu0 0.0
    %173 = vmatprep.subr.mxu0 0.0
    %174 = vmatpush1.msra.mxu0 0.0
    %175 = vmatprep.mubr.f32.mxu0 0.0
    %176 = vmatmul.mubr.f32.gmra.mrb[0].mxu0 %v87
    %v177 = vpop.f32.mrb[0].mxu0
    %v178 = vadd.f32 %v109, %v177
    %v179 = vpop.f32.mrb[0].mxu0
    %180 = vdwg.mxu0
    %v181 = vld [vmem:[#allocation7] sm:$0xff]
    %v182 = vld [vmem:[#allocation7 + $0x8] sm:$0xff]
    %v183 = vld [vmem:[#allocation7 + $0x10] sm:$0xff]
    %v184 = vld [vmem:[#allocation7 + $0x18] sm:$0xff]
    %v185 = vld [vmem:[#allocation7 + $0x20] sm:$0xff]
    %v186 = vld [vmem:[#allocation7 + $0x28] sm:$0xff]
    %v187 = vld [vmem:[#allocation7 + $0x30] sm:$0xff]
    %v188 = vld [vmem:[#allocation7 + $0x38] sm:$0xff]
    %v189 = vld [vmem:[#allocation7 + $0x40] sm:$0xff]
    %v190 = vld [vmem:[#allocation7 + $0x48] sm:$0xff]
    %v191 = vld [vmem:[#allocation7 + $0x50] sm:$0xff]
    %v192 = vld [vmem:[#allocation7 + $0x58] sm:$0xff]
    %v193 = vld [vmem:[#allocation7 + $0x60] sm:$0xff]
    %v194 = vld [vmem:[#allocation7 + $0x68] sm:$0xff]
    %v195 = vld [vmem:[#allocation7 + $0x70] sm:$0xff]
    %v196 = vld [vmem:[#allocation7 + $0x78] sm:$0xff]
    %v197 = vld [vmem:[%s4] sm:$0x1]
    %v199 = vlaneseq
    %v200 = vshrl.u32 %v199, 7
    %v201 = vsub.s32 0, %v200
    %v202 = vrot.slane %v197, %v201
    %204 = vmatprep.subr.mxu0 0.0
    %205 = vmatpush1.msra.mxu0 %v181
    %206 = vmatprep.subr.mxu0 0.0
    %207 = vmatpush1.msra.mxu0 %v182
    %208 = vmatprep.subr.mxu0 0.0
    %209 = vmatpush1.msra.mxu0 %v183
    %210 = vmatprep.subr.mxu0 0.0
    %211 = vmatpush1.msra.mxu0 %v184
    %212 = vmatprep.subr.mxu0 0.0
    %213 = vmatpush1.msra.mxu0 %v185
    %214 = vmatprep.subr.mxu0 0.0
    %215 = vmatpush1.msra.mxu0 %v186
    %216 = vmatprep.subr.mxu0 0.0
    %217 = vmatpush1.msra.mxu0 %v187
    %218 = vmatprep.subr.mxu0 0.0
    %219 = vmatpush1.msra.mxu0 %v188
    %220 = vmatprep.subr.mxu0 0.0
    %221 = vmatpush1.msra.mxu0 %v189
    %222 = vmatprep.subr.mxu0 0.0
    %223 = vmatpush1.msra.mxu0 %v190
    %224 = vmatprep.subr.mxu0 0.0
    %225 = vmatpush1.msra.mxu0 %v191
    %226 = vmatprep.subr.mxu0 0.0
    %227 = vmatpush1.msra.mxu0 %v192
    %228 = vmatprep.subr.mxu0 0.0
    %229 = vmatpush1.msra.mxu0 %v193
    %230 = vmatprep.subr.mxu0 0.0
    %231 = vmatpush1.msra.mxu0 %v194
    %232 = vmatprep.subr.mxu0 0.0
    %233 = vmatpush1.msra.mxu0 %v195
    %234 = vmatprep.subr.mxu0 0.0
    %235 = vmatpush1.msra.mxu0 %v196
    %236 = vmatprep.subr.mxu0 0.0
    %237 = vmatpush1.msra.mxu0 0.0
    %238 = vmatprep.subr.mxu0 0.0
    %239 = vmatpush1.msra.mxu0 0.0
    %240 = vmatprep.subr.mxu0 0.0
    %241 = vmatpush1.msra.mxu0 0.0
    %242 = vmatprep.subr.mxu0 0.0
    %243 = vmatpush1.msra.mxu0 0.0
    %244 = vmatprep.subr.mxu0 0.0
    %245 = vmatpush1.msra.mxu0 0.0
    %246 = vmatprep.subr.mxu0 0.0
    %247 = vmatpush1.msra.mxu0 0.0
    %248 = vmatprep.subr.mxu0 0.0
    %249 = vmatpush1.msra.mxu0 0.0
    %250 = vmatprep.subr.mxu0 0.0
    %251 = vmatpush1.msra.mxu0 0.0
    %252 = vmatprep.subr.mxu0 0.0
    %253 = vmatpush1.msra.mxu0 0.0
    %254 = vmatprep.subr.mxu0 0.0
    %255 = vmatpush1.msra.mxu0 0.0
    %256 = vmatprep.subr.mxu0 0.0
    %257 = vmatpush1.msra.mxu0 0.0
    %258 = vmatprep.subr.mxu0 0.0
    %259 = vmatpush1.msra.mxu0 0.0
    %260 = vmatprep.subr.mxu0 0.0
    %261 = vmatpush1.msra.mxu0 0.0
    %262 = vmatprep.subr.mxu0 0.0
    %263 = vmatpush1.msra.mxu0 0.0
    %264 = vmatprep.subr.mxu0 0.0
    %265 = vmatpush1.msra.mxu0 0.0
    %266 = vmatprep.subr.mxu0 0.0
    %267 = vmatpush1.msra.mxu0 0.0
    %268 = vmatprep.mubr.f32.mxu0 0.0
    %269 = vmatmul.mubr.f32.gmra.mrb[0].mxu0 %v87
    %v270 = vpop.f32.mrb[0].mxu0
    %v271 = vadd.f32 %v202, %v270
    %v272 = vpop.f32.mrb[0].mxu0
    %273 = vdwg.mxu0
    %v274 = vmul.f32 %v271, 0.5
    %v275 = vmul.f32 %v274, 1.442695
    %v276 = vpow.pop %v275
    %v277 = vld [vmem:[%s7] sm:$0xff]
    %v278 = vmul.f32 %v277, %v276
    %v279 = vadd.f32 %v178, %v278
    %v280 = vld [vmem:[#allocation8] sm:$0xff]
    %v281 = vld [vmem:[#allocation8 + $0x8] sm:$0xff]
    %v282 = vld [vmem:[#allocation8 + $0x10] sm:$0xff]
    %v283 = vld [vmem:[#allocation8 + $0x18] sm:$0xff]
    %v284 = vld [vmem:[#allocation8 + $0x20] sm:$0xff]
    %v285 = vld [vmem:[#allocation8 + $0x28] sm:$0xff]
    %v286 = vld [vmem:[#allocation8 + $0x30] sm:$0xff]
    %v287 = vld [vmem:[#allocation8 + $0x38] sm:$0xff]
    %v288 = vld [vmem:[#allocation8 + $0x40] sm:$0xff]
    %v289 = vld [vmem:[#allocation8 + $0x48] sm:$0xff]
    %v290 = vld [vmem:[#allocation8 + $0x50] sm:$0xff]
    %v291 = vld [vmem:[#allocation8 + $0x58] sm:$0xff]
    %v292 = vld [vmem:[#allocation8 + $0x60] sm:$0xff]
    %v293 = vld [vmem:[#allocation8 + $0x68] sm:$0xff]
    %v294 = vld [vmem:[#allocation8 + $0x70] sm:$0xff]
    %v295 = vld [vmem:[#allocation8 + $0x78] sm:$0xff]
    %v296 = vld [vmem:[%s6] sm:$0x1]
    %v298 = vlaneseq
    %v299 = vshrl.u32 %v298, 7
    %v300 = vsub.s32 0, %v299
    %v301 = vrot.slane %v296, %v300
    %303 = vmatprep.subr.mxu0 0.0
    %304 = vmatpush1.msra.mxu0 %v280
    %305 = vmatprep.subr.mxu0 0.0
    %306 = vmatpush1.msra.mxu0 %v281
    %307 = vmatprep.subr.mxu0 0.0
    %308 = vmatpush1.msra.mxu0 %v282
    %309 = vmatprep.subr.mxu0 0.0
    %310 = vmatpush1.msra.mxu0 %v283
    %311 = vmatprep.subr.mxu0 0.0
    %312 = vmatpush1.msra.mxu0 %v284
    %313 = vmatprep.subr.mxu0 0.0
    %314 = vmatpush1.msra.mxu0 %v285
    %315 = vmatprep.subr.mxu0 0.0
    %316 = vmatpush1.msra.mxu0 %v286
    %317 = vmatprep.subr.mxu0 0.0
    %318 = vmatpush1.msra.mxu0 %v287
    %319 = vmatprep.subr.mxu0 0.0
    %320 = vmatpush1.msra.mxu0 %v288
    %321 = vmatprep.subr.mxu0 0.0
    %322 = vmatpush1.msra.mxu0 %v289
    %323 = vmatprep.subr.mxu0 0.0
    %324 = vmatpush1.msra.mxu0 %v290
    %325 = vmatprep.subr.mxu0 0.0
    %326 = vmatpush1.msra.mxu0 %v291
    %327 = vmatprep.subr.mxu0 0.0
    %328 = vmatpush1.msra.mxu0 %v292
    %329 = vmatprep.subr.mxu0 0.0
    %330 = vmatpush1.msra.mxu0 %v293
    %331 = vmatprep.subr.mxu0 0.0
    %332 = vmatpush1.msra.mxu0 %v294
    %333 = vmatprep.subr.mxu0 0.0
    %334 = vmatpush1.msra.mxu0 %v295
    %335 = vmatprep.subr.mxu0 0.0
    %336 = vmatpush1.msra.mxu0 0.0
    %337 = vmatprep.subr.mxu0 0.0
    %338 = vmatpush1.msra.mxu0 0.0
    %339 = vmatprep.subr.mxu0 0.0
    %340 = vmatpush1.msra.mxu0 0.0
    %341 = vmatprep.subr.mxu0 0.0
    %342 = vmatpush1.msra.mxu0 0.0
    %343 = vmatprep.subr.mxu0 0.0
    %344 = vmatpush1.msra.mxu0 0.0
    %345 = vmatprep.subr.mxu0 0.0
    %346 = vmatpush1.msra.mxu0 0.0
    %347 = vmatprep.subr.mxu0 0.0
    %348 = vmatpush1.msra.mxu0 0.0
    %349 = vmatprep.subr.mxu0 0.0
    %350 = vmatpush1.msra.mxu0 0.0
    %351 = vmatprep.subr.mxu0 0.0
    %352 = vmatpush1.msra.mxu0 0.0
    %353 = vmatprep.subr.mxu0 0.0
    %354 = vmatpush1.msra.mxu0 0.0
    %355 = vmatprep.subr.mxu0 0.0
    %356 = vmatpush1.msra.mxu0 0.0
    %357 = vmatprep.subr.mxu0 0.0
    %358 = vmatpush1.msra.mxu0 0.0
    %359 = vmatprep.subr.mxu0 0.0
    %360 = vmatpush1.msra.mxu0 0.0
    %361 = vmatprep.subr.mxu0 0.0
    %362 = vmatpush1.msra.mxu0 0.0
    %363 = vmatprep.subr.mxu0 0.0
    %364 = vmatpush1.msra.mxu0 0.0
    %365 = vmatprep.subr.mxu0 0.0
    %366 = vmatpush1.msra.mxu0 0.0
    %367 = vmatprep.mubr.f32.mxu0 0.0
    %368 = vmatmul.mubr.f32.gmra.mrb[0].mxu0 %v279
    %v369 = vpop.f32.mrb[0].mxu0
    %v370 = vadd.f32 %v301, %v369
    %v371 = vpop.f32.mrb[0].mxu0
    %372 = vdwg.mxu0
    %373 = vst [vmem:[#allocation10] sm:$0xff] %v370
    %374 = vst [vmem:[#allocation11] sm:$0xff] %v178
    %375 = vst [vmem:[#allocation13] sm:$0xff] %v271
    // Predicated region
    $region50: #{tpu_custom_call.1} parent=1 // pred_check
      _
    $region51: #{tpu_custom_call.1} parent=1 // pred_check_branch
      %377 = sbr.rel (0) target = $region53
    $region52: #{tpu_custom_call.1} parent=1 // pred_region
      %s379 = ssub.s32 128, 128
      %380 = vsyncadd [#allocation4], %s379
      %s382 = sshll.u32 [#allocation10], 4
      %s383 = int_to_ptr.vmem [resolvable:$true] %s382
      %385 = dma.vmem_to_hbm [thread:$0]  %s383, 128, %s8, [#allocation4]
    $region53: #{tpu_custom_call.1} parent=1 // pred_fallthru
      _
    // Predicated region
    $region54: #{tpu_custom_call.1} parent=1 // pred_check
      _
    $region55: #{tpu_custom_call.1} parent=1 // pred_check_branch
      %387 = sbr.rel (0) target = $region57
    $region56: #{tpu_custom_call.1} parent=1 // pred_region
      %s389 = ssub.s32 128, 128
      %390 = vsyncadd [#allocation12], %s389
      %s392 = sshll.u32 [#allocation11], 4
      %s393 = int_to_ptr.vmem [resolvable:$true] %s392
      %395 = dma.vmem_to_hbm [thread:$0]  %s393, 128, %s9, [#allocation12]
    $region57: #{tpu_custom_call.1} parent=1 // pred_fallthru
      _
    // Predicated region
    $region58: #{tpu_custom_call.1} parent=1 // pred_check
      _
    $region59: #{tpu_custom_call.1} parent=1 // pred_check_branch
      %397 = sbr.rel (0) target = $region61
    $region60: #{tpu_custom_call.1} parent=1 // pred_region
      %s399 = ssub.s32 128, 128
      %400 = vsyncadd [#allocation12], %s399
      %s402 = sshll.u32 [#allocation13], 4
      %s403 = int_to_ptr.vmem [resolvable:$true] %s402
      %405 = dma.vmem_to_hbm [thread:$0]  %s403, 128, %s10, [#allocation12]
    $region61: #{tpu_custom_call.1} parent=1 // pred_fallthru
      _
    // Predicated region
    $region62: #{tpu_custom_call.1} parent=1 // pred_check
      _
    $region63: #{tpu_custom_call.1} parent=1 // pred_check_branch
      %407 = sbr.rel (0) target = $region65
    $region64: #{tpu_custom_call.1} parent=1 // pred_region
      %408 = dma.done [#allocation4], 128
    $region65: #{tpu_custom_call.1} parent=1 // pred_fallthru
      _
    // Predicated region
    $region66: #{tpu_custom_call.1} parent=1 // pred_check
      _
    $region67: #{tpu_custom_call.1} parent=1 // pred_check_branch
      %410 = sbr.rel (0) target = $region69
    $region68: #{tpu_custom_call.1} parent=1 // pred_region
      %411 = dma.done [#allocation12], 128
    $region69: #{tpu_custom_call.1} parent=1 // pred_fallthru
      _
    // Predicated region
    $region70: #{tpu_custom_call.1} parent=1 // pred_check
      _
    $region71: #{tpu_custom_call.1} parent=1 // pred_check_branch
      %413 = sbr.rel (0) target = $region73
    $region72: #{tpu_custom_call.1} parent=1 // pred_region
      %414 = dma.done [#allocation12], 128
    $region73: #{tpu_custom_call.1} parent=1 // pred_fallthru
      _
    %415 = vsyncpa [#allocation3], 1
    %416 = vsyncpa [#allocation6], 1
    %417 = vsyncpa [#allocation9], 1
    %418 = vsyncpa [#allocation4], 1
    %419 = vsyncpa [#allocation12], 1

</llo_original>
